<compile_context>
chip_gen: v7x
topology: tpu7x:2x2x1
jax: 0.10.0
libtpu: 0.0.40
codegen_flags: <defaults>
</compile_context>

<pallas_src>
import functools

import jax
import jax.numpy as jnp
from jax.experimental import pallas as pl
from jax.experimental.pallas import tpu as pltpu


def _transition_kernel(x_ref, scale_ref, bias_ref, w_ref, o_ref):
    """One row-tile: fused BN + ReLU + (2x2 avg-pool tap sum) + 1x1 conv.

    x_ref : (4, tm, Cin) f32   stacked pool taps
    scale_ref, bias_ref : (1, Cin) f32   folded BN scale / bias
    w_ref : (Cin, Cout_pad) bf16   conv weight with 0.25 pool factor folded in
    o_ref : (tm, Cout_pad) f32
    """
    tm = x_ref.shape[1]
    c_in = x_ref.shape[2]
    # Hoist the per-channel broadcasts once (JAX does not CSE broadcast_in_dim).
    s = jnp.broadcast_to(scale_ref[...], (tm, c_in))
    b = jnp.broadcast_to(bias_ref[...], (tm, c_in))

    def bn_relu_tap(i):
        return jnp.maximum(x_ref[i] * s + b, 0.0)            # f32 VPU math

    # Sum of the four pooling taps (the 1/4 factor lives in the weight).
    y = bn_relu_tap(0) + bn_relu_tap(1) + bn_relu_tap(2) + bn_relu_tap(3)

    # 1x1 conv == channel matmul on the MXU; bf16 x bf16 -> f32 accumulate.
    o_ref[...] = jnp.dot(y.astype(jnp.bfloat16), w_ref[...],
                         preferred_element_type=jnp.float32).astype(o_ref.dtype)


def _round_up(x, m):
    return ((x + m - 1) // m) * m


@functools.partial(jax.jit, static_argnames=("eps", "tm"))
def transition_forward(x_nchw, gamma, beta, run_mean, run_var, w_conv,
                       eps=1e-5, tm=512):
    """Equivalent of _Transition.forward on an NCHW float32 input.

    x_nchw : (N, C_in, H, W)
    gamma, beta, run_mean, run_var : (C_in,)
    w_conv : (C_out, C_in, 1, 1)   (PyTorch Conv2d weight layout, bias=False)
    returns: (N, C_out, H//2, W//2)
    """
    N, C_in, H, W = x_nchw.shape
    C_out = w_conv.shape[0]
    Ho, Wo = H // 2, W // 2
    M = N * Ho * Wo

    # ---- single fused prologue copy: NCHW -> stacked pool taps (4, M, Cin) --
    x = x_nchw.astype(jnp.float32)[:, :, :2 * Ho, :2 * Wo]
    x = x.reshape(N, C_in, Ho, 2, Wo, 2)
    x = jnp.transpose(x, (3, 5, 0, 2, 4, 1))            # (2, 2, N, Ho, Wo, Cin)
    taps = x.reshape(4, M, C_in)                        # one XLA copy total

    # ---- fold eval-mode BN running stats into per-channel scale / bias ------
    inv = 1.0 / jnp.sqrt(run_var.astype(jnp.float32) + eps)
    scale = (gamma * inv).reshape(1, C_in).astype(jnp.float32)
    bias = (beta - run_mean * gamma * inv).reshape(1, C_in).astype(jnp.float32)

    # ---- conv weight: (Cout,Cin,1,1) -> (Cin, Cout_pad), fold 0.25, bf16 ----
    C_out_pad = _round_up(C_out, 128)                   # lane-dense output
    w = jnp.transpose(w_conv.reshape(C_out, C_in), (1, 0)).astype(jnp.float32)
    w = w * 0.25                                        # exact (power of two)
    if C_out_pad != C_out:
        w = jnp.pad(w, ((0, 0), (0, C_out_pad - C_out)))
    w = w.astype(jnp.bfloat16)

    # ---- tiling: big row tiles, ragged last block masked by Pallas ----------
    if M >= 8:
        tm_eff = min(tm, (M // 8) * 8)                  # multiple of 8, <= M
    else:
        tm_eff = M                                      # tiny input: full block
    grid = (pl.cdiv(M, tm_eff),)

    out_flat = pl.pallas_call(
        _transition_kernel,
        out_shape=jax.ShapeDtypeStruct((M, C_out_pad), jnp.float32),
        grid_spec=pltpu.PrefetchScalarGridSpec(
            num_scalar_prefetch=0,
            grid=grid,
            in_specs=[
                pl.BlockSpec((4, tm_eff, C_in), lambda i: (0, i, 0)),   # taps
                pl.BlockSpec((1, C_in), lambda i: (0, 0)),              # scale
                pl.BlockSpec((1, C_in), lambda i: (0, 0)),              # bias
                pl.BlockSpec((C_in, C_out_pad), lambda i: (0, 0)),      # weight
            ],
            out_specs=pl.BlockSpec((tm_eff, C_out_pad), lambda i: (i, 0)),
        ),
        compiler_params=pltpu.CompilerParams(
            dimension_semantics=("parallel",),
            vmem_limit_bytes=48 * 1024 * 1024,
        ),
    )(taps, scale, bias, w)

    out = out_flat[:, :C_out].reshape(N, Ho, Wo, C_out)
    # TODO(synk): a NHWC-consuming next block could skip this final transpose.
    return jnp.transpose(out, (0, 3, 1, 2))             # back to NCHW


def _reference_forward(x_nchw, gamma, beta, run_mean, run_var, w_conv, eps=1e-5):
    """Pure-JAX reference mirroring the PyTorch module (eval-mode BN)."""
    inv = 1.0 / jnp.sqrt(run_var + eps)
    xn = (x_nchw - run_mean[None, :, None, None]) * inv[None, :, None, None]
    xn = xn * gamma[None, :, None, None] + beta[None, :, None, None]
    xn = jnp.maximum(xn, 0.0)
    w = w_conv.reshape(w_conv.shape[0], w_conv.shape[1])          # (Cout, Cin)
    y = jnp.einsum("nchw,dc->ndhw", xn, w)
    N, D, H, W = y.shape
    y = y.reshape(N, D, H // 2, 2, W // 2, 2).mean(axis=(3, 5))
    return y


if __name__ == "__main__":
    key = jax.random.PRNGKey(0)
    k1, k2, k3, k4, k5, k6 = jax.random.split(key, 6)

    N, C_in, H, W = 2, 4, 16, 16
    C_out = 2

    x = jax.random.normal(k1, (N, C_in, H, W), dtype=jnp.float32)

    # deterministic "parameters"
    gamma = 0.5 + jax.random.uniform(k2, (C_in,), dtype=jnp.float32)
    beta = 0.1 * jax.random.normal(k3, (C_in,), dtype=jnp.float32)
    run_mean = 0.2 * jax.random.normal(k4, (C_in,), dtype=jnp.float32)
    run_var = 0.5 + jax.random.uniform(k5, (C_in,), dtype=jnp.float32)
    w_conv = jax.random.normal(k6, (C_out, C_in, 1, 1), dtype=jnp.float32) * 0.1

    out = transition_forward(x, gamma, beta, run_mean, run_var, w_conv)
    out = jax.block_until_ready(out)

    ref = _reference_forward(x, gamma, beta, run_mean, run_var, w_conv)
    assert out.shape == (N, C_out, H // 2, W // 2), out.shape
    # bf16 MXU operands -> relax tolerance vs the all-f32 reference.
    err = float(jnp.max(jnp.abs(out - ref)))
    assert jnp.allclose(out, ref, atol=2e-2, rtol=2e-2), err

    print("KERNEL_OK")
</pallas_src>

<mosaic_0001>
module attributes {stable_mosaic.version = 11 : i64} {
  func.func @_transition_kernel(%arg0: i32, %arg1: memref<4x128x4xf32, #tpu.memory_space<vmem>>, %arg2: memref<1x4xf32, #tpu.memory_space<vmem>>, %arg3: memref<1x4xf32, #tpu.memory_space<vmem>>, %arg4: memref<4x128xbf16, #tpu.memory_space<vmem>>, %arg5: memref<128x128xf32, #tpu.memory_space<vmem>>) attributes {dimension_semantics = [#tpu.dimension_semantics<parallel>], iteration_bounds = array<i64: 1>, scalar_prefetch = 0 : i64, scratch_operands = 0 : i64, tpu.core_type = #tpu.core_type<tc>, window_params = [{transform_indices = @transform_0, window_bounds = array<i64: 4, 128, 4>}, {pipeline_mode = #tpu.pipeline_mode<synchronous>, transform_indices = @transform_1, window_bounds = array<i64: 1, 4>}, {pipeline_mode = #tpu.pipeline_mode<synchronous>, transform_indices = @transform_2, window_bounds = array<i64: 1, 4>}, {pipeline_mode = #tpu.pipeline_mode<synchronous>, transform_indices = @transform_3, window_bounds = array<i64: 4, 128>}, {transform_indices = @transform_4, window_bounds = array<i64: 128, 128>}]} {
    %c0 = arith.constant 0 : index
    %c0_0 = arith.constant 0 : index
    %0 = vector.load %arg2[%c0, %c0_0] : memref<1x4xf32, #tpu.memory_space<vmem>>, vector<1x4xf32>
    %1 = vector.shape_cast %0 : vector<1x4xf32> to vector<1x4xf32>
    %2 = vector.broadcast %1 : vector<1x4xf32> to vector<128x4xf32>
    %c0_1 = arith.constant 0 : index
    %c0_2 = arith.constant 0 : index
    %3 = vector.load %arg3[%c0_1, %c0_2] : memref<1x4xf32, #tpu.memory_space<vmem>>, vector<1x4xf32>
    %4 = vector.shape_cast %3 : vector<1x4xf32> to vector<1x4xf32>
    %5 = vector.broadcast %4 : vector<1x4xf32> to vector<128x4xf32>
    %c0_3 = arith.constant 0 : index
    %c0_4 = arith.constant 0 : index
    %c0_5 = arith.constant 0 : index
    %6 = vector.load %arg1[%c0_3, %c0_4, %c0_5] : memref<4x128x4xf32, #tpu.memory_space<vmem>>, vector<1x128x4xf32>
    %7 = vector.shape_cast %6 : vector<1x128x4xf32> to vector<128x4xf32>
    %8 = arith.mulf %7, %2 : vector<128x4xf32>
    %9 = arith.addf %8, %5 : vector<128x4xf32>
    %cst = arith.constant 0.000000e+00 : f32
    %10 = vector.broadcast %cst : f32 to vector<128x4xf32>
    %11 = arith.maximumf %9, %10 : vector<128x4xf32>
    %c1 = arith.constant 1 : index
    %c0_6 = arith.constant 0 : index
    %c0_7 = arith.constant 0 : index
    %12 = vector.load %arg1[%c1, %c0_6, %c0_7] : memref<4x128x4xf32, #tpu.memory_space<vmem>>, vector<1x128x4xf32>
    %13 = vector.shape_cast %12 : vector<1x128x4xf32> to vector<128x4xf32>
    %14 = arith.mulf %13, %2 : vector<128x4xf32>
    %15 = arith.addf %14, %5 : vector<128x4xf32>
    %cst_8 = arith.constant 0.000000e+00 : f32
    %16 = vector.broadcast %cst_8 : f32 to vector<128x4xf32>
    %17 = arith.maximumf %15, %16 : vector<128x4xf32>
    %18 = arith.addf %11, %17 : vector<128x4xf32>
    %c2 = arith.constant 2 : index
    %c0_9 = arith.constant 0 : index
    %c0_10 = arith.constant 0 : index
    %19 = vector.load %arg1[%c2, %c0_9, %c0_10] : memref<4x128x4xf32, #tpu.memory_space<vmem>>, vector<1x128x4xf32>
    %20 = vector.shape_cast %19 : vector<1x128x4xf32> to vector<128x4xf32>
    %21 = arith.mulf %20, %2 : vector<128x4xf32>
    %22 = arith.addf %21, %5 : vector<128x4xf32>
    %cst_11 = arith.constant 0.000000e+00 : f32
    %23 = vector.broadcast %cst_11 : f32 to vector<128x4xf32>
    %24 = arith.maximumf %22, %23 : vector<128x4xf32>
    %25 = arith.addf %18, %24 : vector<128x4xf32>
    %c3 = arith.constant 3 : index
    %c0_12 = arith.constant 0 : index
    %c0_13 = arith.constant 0 : index
    %26 = vector.load %arg1[%c3, %c0_12, %c0_13] : memref<4x128x4xf32, #tpu.memory_space<vmem>>, vector<1x128x4xf32>
    %27 = vector.shape_cast %26 : vector<1x128x4xf32> to vector<128x4xf32>
    %28 = arith.mulf %27, %2 : vector<128x4xf32>
    %29 = arith.addf %28, %5 : vector<128x4xf32>
    %cst_14 = arith.constant 0.000000e+00 : f32
    %30 = vector.broadcast %cst_14 : f32 to vector<128x4xf32>
    %31 = arith.maximumf %29, %30 : vector<128x4xf32>
    %32 = arith.addf %25, %31 : vector<128x4xf32>
    %33 = arith.truncf %32 : vector<128x4xf32> to vector<128x4xbf16>
    %c0_15 = arith.constant 0 : index
    %c0_16 = arith.constant 0 : index
    %34 = vector.load %arg4[%c0_15, %c0_16] : memref<4x128xbf16, #tpu.memory_space<vmem>>, vector<4x128xbf16>
    %cst_17 = arith.constant dense<0.000000e+00> : vector<128x128xf32>
    %35 = tpu.matmul %33, %34, %cst_17 {dimension_numbers = #tpu.dot_dimension_numbers<[1], [0], [0], [1], [0, 0, 1, 1], [], []>} : vector<128x4xbf16>, vector<4x128xbf16>, vector<128x128xf32> -> vector<128x128xf32>
    %c0_18 = arith.constant 0 : index
    %c0_19 = arith.constant 0 : index
    %36 = vector.load %arg5[%c0_18, %c0_19] : memref<128x128xf32, #tpu.memory_space<vmem>>, vector<128x128xf32>
    tpu.vector_store %arg5[%c0_18, %c0_19], %35 {strides = array<i32>} : memref<128x128xf32, #tpu.memory_space<vmem>>, vector<128x128xf32>,
    return
  }
  func.func @transform_0(%arg0: i32) -> (i32, i32, i32) {
    %c0_i32 = arith.constant 0 : i32
    %c0_i32_0 = arith.constant 0 : i32
    %c0_i32_1 = arith.constant 0 : i32
    return %c0_i32, %arg0, %c0_i32_0 : i32, i32, i32
  }
  func.func @transform_1(%arg0: i32) -> (i32, i32) {
    %c0_i32 = arith.constant 0 : i32
    %c0_i32_0 = arith.constant 0 : i32
    %c0_i32_1 = arith.constant 0 : i32
    return %c0_i32, %c0_i32_0 : i32, i32
  }
  func.func @transform_2(%arg0: i32) -> (i32, i32) {
    %c0_i32 = arith.constant 0 : i32
    %c0_i32_0 = arith.constant 0 : i32
    %c0_i32_1 = arith.constant 0 : i32
    return %c0_i32, %c0_i32_0 : i32, i32
  }
  func.func @transform_3(%arg0: i32) -> (i32, i32) {
    %c0_i32 = arith.constant 0 : i32
    %c0_i32_0 = arith.constant 0 : i32
    %c0_i32_1 = arith.constant 0 : i32
    return %c0_i32, %c0_i32_0 : i32, i32
  }
  func.func @transform_4(%arg0: i32) -> (i32, i32) {
    %c0_i32 = arith.constant 0 : i32
    %c0_i32_0 = arith.constant 0 : i32
    return %arg0, %c0_i32 : i32, i32
  }
}

</mosaic_0001>

<llo_original>
// kernel: transition_forward.1
$region0: #{transition_forward.1}
  #allocation0 [shape = 'u32[]', space=smem, size = 0x4, offset = 0x4, fixed_abs, tag = 'smem constant byte address 0x4 - core index']
  #allocation1 [shape = 'u32[144,128]{1,0:T(1,128)}', space=vmem, size = 0x12000, scoped, tag = 'internal scratch']
  %s0 = inlined_call_operand.vmem [shape: f32[4,128,4], index: 0, kind: input, shape index: {}]
  %s1 = inlined_call_operand.vmem [shape: f32[1,4], index: 1, kind: input, shape index: {}]
  %s2 = inlined_call_operand.vmem [shape: f32[1,4], index: 2, kind: input, shape index: {}]
  %s3 = inlined_call_operand.vmem [shape: bf16[4,128], index: 3, kind: input, shape index: {}]
  %s4 = inlined_call_operand.vmem [shape: f32[128,128], index: 4, kind: output, shape index: {}]
  %s5 = sld [smem:[#allocation0]]
  $region26: #{transition_forward.1} parent=0
    _
  %s7 = ssub.s32 1, %s5
  %s8 = scalar_select 0, %s7, %s5
  // Predicated region
  $region2: #{transition_forward.1} parent=0 // pred_check
    _
  $region3: #{transition_forward.1} parent=0 // pred_check_branch
    %10 = sbr.rel (0) target = $region5
  $region4: #{transition_forward.1} parent=0 // pred_region
    _
  $region5: #{transition_forward.1} parent=0 // pred_fallthru
    _
  // Predicated region
  $region6: #{transition_forward.1} parent=0 // pred_check
    _
  $region7: #{transition_forward.1} parent=0 // pred_check_branch
    %12 = sbr.rel (0) target = $region9
  $region8: #{transition_forward.1} parent=0 // pred_region
    _
  $region9: #{transition_forward.1} parent=0 // pred_fallthru
    _
  // Predicated region
  $region10: #{transition_forward.1} parent=0 // pred_check
    _
  $region11: #{transition_forward.1} parent=0 // pred_check_branch
    %14 = sbr.rel (0) target = $region13
  $region12: #{transition_forward.1} parent=0 // pred_region
    _
  $region13: #{transition_forward.1} parent=0 // pred_fallthru
    _
  // Predicated region
  $region14: #{transition_forward.1} parent=0 // pred_check
    _
  $region15: #{transition_forward.1} parent=0 // pred_check_branch
    %16 = sbr.rel (0) target = $region17
  $region16: #{transition_forward.1} parent=0 // pred_region
    _
  $region17: #{transition_forward.1} parent=0 // pred_fallthru
    _
  %v18 = vld [vmem:[%s1] sm:$0x1]
  %v20 = vlaneseq
  %v21 = vshrl.u32 %v20, 7
  %v22 = vsub.s32 0, %v21
  %v23 = vrot.slane %v18, %v22
  %v25 = vld [vmem:[%s2] sm:$0x1]
  %v27 = vlaneseq
  %v28 = vshrl.u32 %v27, 7
  %v29 = vsub.s32 0, %v28
  %v30 = vrot.slane %v25, %v29
  %v32 = vld [vmem:[%s0] sm:$0xff]
  %v33 = vld [vmem:[%s0 + $0x8] sm:$0xff]
  %v34 = vld [vmem:[%s0 + $0x10] sm:$0xff]
  %v35 = vld [vmem:[%s0 + $0x18] sm:$0xff]
  %v36 = vld [vmem:[%s0 + $0x20] sm:$0xff]
  %v37 = vld [vmem:[%s0 + $0x28] sm:$0xff]
  %v38 = vld [vmem:[%s0 + $0x30] sm:$0xff]
  %v39 = vld [vmem:[%s0 + $0x38] sm:$0xff]
  %v40 = vld [vmem:[%s0 + $0x40] sm:$0xff]
  %v41 = vld [vmem:[%s0 + $0x48] sm:$0xff]
  %v42 = vld [vmem:[%s0 + $0x50] sm:$0xff]
  %v43 = vld [vmem:[%s0 + $0x58] sm:$0xff]
  %v44 = vld [vmem:[%s0 + $0x60] sm:$0xff]
  %v45 = vld [vmem:[%s0 + $0x68] sm:$0xff]
  %v46 = vld [vmem:[%s0 + $0x70] sm:$0xff]
  %v47 = vld [vmem:[%s0 + $0x78] sm:$0xff]
  %v48 = vmul.f32 %v32, %v23
  %v49 = vmul.f32 %v33, %v23
  %v50 = vmul.f32 %v34, %v23
  %v51 = vmul.f32 %v35, %v23
  %v52 = vmul.f32 %v36, %v23
  %v53 = vmul.f32 %v37, %v23
  %v54 = vmul.f32 %v38, %v23
  %v55 = vmul.f32 %v39, %v23
  %v56 = vmul.f32 %v40, %v23
  %v57 = vmul.f32 %v41, %v23
  %v58 = vmul.f32 %v42, %v23
  %v59 = vmul.f32 %v43, %v23
  %v60 = vmul.f32 %v44, %v23
  %v61 = vmul.f32 %v45, %v23
  %v62 = vmul.f32 %v46, %v23
  %v63 = vmul.f32 %v47, %v23
  %v64 = vadd.f32 %v48, %v30
  %v65 = vadd.f32 %v49, %v30
  %v66 = vadd.f32 %v50, %v30
  %v67 = vadd.f32 %v51, %v30
  %v68 = vadd.f32 %v52, %v30
  %v69 = vadd.f32 %v53, %v30
  %v70 = vadd.f32 %v54, %v30
  %v71 = vadd.f32 %v55, %v30
  %v72 = vadd.f32 %v56, %v30
  %v73 = vadd.f32 %v57, %v30
  %v74 = vadd.f32 %v58, %v30
  %v75 = vadd.f32 %v59, %v30
  %v76 = vadd.f32 %v60, %v30
  %v77 = vadd.f32 %v61, %v30
  %v78 = vadd.f32 %v62, %v30
  %v79 = vadd.f32 %v63, %v30
  %v80 = vmax.f32 %v64, 0.0
  %v81 = vmax.f32 %v65, 0.0
  %v82 = vmax.f32 %v66, 0.0
  %v83 = vmax.f32 %v67, 0.0
  %v84 = vmax.f32 %v68, 0.0
  %v85 = vmax.f32 %v69, 0.0
  %v86 = vmax.f32 %v70, 0.0
  %v87 = vmax.f32 %v71, 0.0
  %v88 = vmax.f32 %v72, 0.0
  %v89 = vmax.f32 %v73, 0.0
  %v90 = vmax.f32 %v74, 0.0
  %v91 = vmax.f32 %v75, 0.0
  %v92 = vmax.f32 %v76, 0.0
  %v93 = vmax.f32 %v77, 0.0
  %v94 = vmax.f32 %v78, 0.0
  %v95 = vmax.f32 %v79, 0.0
  %s96 = scalar_lea.vmem %s0, 128
  %v97 = vld [vmem:[%s96] sm:$0xff]
  %v98 = vld [vmem:[%s96 + $0x8] sm:$0xff]
  %v99 = vld [vmem:[%s96 + $0x10] sm:$0xff]
  %v100 = vld [vmem:[%s96 + $0x18] sm:$0xff]
  %v101 = vld [vmem:[%s96 + $0x20] sm:$0xff]
  %v102 = vld [vmem:[%s96 + $0x28] sm:$0xff]
  %v103 = vld [vmem:[%s96 + $0x30] sm:$0xff]
  %v104 = vld [vmem:[%s96 + $0x38] sm:$0xff]
  %v105 = vld [vmem:[%s96 + $0x40] sm:$0xff]
  %v106 = vld [vmem:[%s96 + $0x48] sm:$0xff]
  %v107 = vld [vmem:[%s96 + $0x50] sm:$0xff]
  %v108 = vld [vmem:[%s96 + $0x58] sm:$0xff]
  %v109 = vld [vmem:[%s96 + $0x60] sm:$0xff]
  %v110 = vld [vmem:[%s96 + $0x68] sm:$0xff]
  %v111 = vld [vmem:[%s96 + $0x70] sm:$0xff]
  %v112 = vld [vmem:[%s96 + $0x78] sm:$0xff]
  %v113 = vmul.f32 %v97, %v23
  %v114 = vmul.f32 %v98, %v23
  %v115 = vmul.f32 %v99, %v23
  %v116 = vmul.f32 %v100, %v23
  %v117 = vmul.f32 %v101, %v23
  %v118 = vmul.f32 %v102, %v23
  %v119 = vmul.f32 %v103, %v23
  %v120 = vmul.f32 %v104, %v23
  %v121 = vmul.f32 %v105, %v23
  %v122 = vmul.f32 %v106, %v23
  %v123 = vmul.f32 %v107, %v23
  %v124 = vmul.f32 %v108, %v23
  %v125 = vmul.f32 %v109, %v23
  %v126 = vmul.f32 %v110, %v23
  %v127 = vmul.f32 %v111, %v23
  %v128 = vmul.f32 %v112, %v23
  %v129 = vadd.f32 %v113, %v30
  %v130 = vadd.f32 %v114, %v30
  %v131 = vadd.f32 %v115, %v30
  %v132 = vadd.f32 %v116, %v30
  %v133 = vadd.f32 %v117, %v30
  %v134 = vadd.f32 %v118, %v30
  %v135 = vadd.f32 %v119, %v30
  %v136 = vadd.f32 %v120, %v30
  %v137 = vadd.f32 %v121, %v30
  %v138 = vadd.f32 %v122, %v30
  %v139 = vadd.f32 %v123, %v30
  %v140 = vadd.f32 %v124, %v30
  %v141 = vadd.f32 %v125, %v30
  %v142 = vadd.f32 %v126, %v30
  %v143 = vadd.f32 %v127, %v30
  %v144 = vadd.f32 %v128, %v30
  %v145 = vmax.f32 %v129, 0.0
  %v146 = vmax.f32 %v130, 0.0
  %v147 = vmax.f32 %v131, 0.0
  %v148 = vmax.f32 %v132, 0.0
  %v149 = vmax.f32 %v133, 0.0
  %v150 = vmax.f32 %v134, 0.0
  %v151 = vmax.f32 %v135, 0.0
  %v152 = vmax.f32 %v136, 0.0
  %v153 = vmax.f32 %v137, 0.0
  %v154 = vmax.f32 %v138, 0.0
  %v155 = vmax.f32 %v139, 0.0
  %v156 = vmax.f32 %v140, 0.0
  %v157 = vmax.f32 %v141, 0.0
  %v158 = vmax.f32 %v142, 0.0
  %v159 = vmax.f32 %v143, 0.0
  %v160 = vmax.f32 %v144, 0.0
  %v161 = vadd.f32 %v80, %v145
  %v162 = vadd.f32 %v81, %v146
  %v163 = vadd.f32 %v82, %v147
  %v164 = vadd.f32 %v83, %v148
  %v165 = vadd.f32 %v84, %v149
  %v166 = vadd.f32 %v85, %v150
  %v167 = vadd.f32 %v86, %v151
  %v168 = vadd.f32 %v87, %v152
  %v169 = vadd.f32 %v88, %v153
  %v170 = vadd.f32 %v89, %v154
  %v171 = vadd.f32 %v90, %v155
  %v172 = vadd.f32 %v91, %v156
  %v173 = vadd.f32 %v92, %v157
  %v174 = vadd.f32 %v93, %v158
  %v175 = vadd.f32 %v94, %v159
  %v176 = vadd.f32 %v95, %v160
  %s177 = scalar_lea.vmem %s0, 256
  %v178 = vld [vmem:[%s177] sm:$0xff]
  %v179 = vld [vmem:[%s177 + $0x8] sm:$0xff]
  %v180 = vld [vmem:[%s177 + $0x10] sm:$0xff]
  %v181 = vld [vmem:[%s177 + $0x18] sm:$0xff]
  %v182 = vld [vmem:[%s177 + $0x20] sm:$0xff]
  %v183 = vld [vmem:[%s177 + $0x28] sm:$0xff]
  %v184 = vld [vmem:[%s177 + $0x30] sm:$0xff]
  %v185 = vld [vmem:[%s177 + $0x38] sm:$0xff]
  %v186 = vld [vmem:[%s177 + $0x40] sm:$0xff]
  %v187 = vld [vmem:[%s177 + $0x48] sm:$0xff]
  %v188 = vld [vmem:[%s177 + $0x50] sm:$0xff]
  %v189 = vld [vmem:[%s177 + $0x58] sm:$0xff]
  %v190 = vld [vmem:[%s177 + $0x60] sm:$0xff]
  %v191 = vld [vmem:[%s177 + $0x68] sm:$0xff]
  %v192 = vld [vmem:[%s177 + $0x70] sm:$0xff]
  %v193 = vld [vmem:[%s177 + $0x78] sm:$0xff]
  %v194 = vmul.f32 %v178, %v23
  %v195 = vmul.f32 %v179, %v23
  %v196 = vmul.f32 %v180, %v23
  %v197 = vmul.f32 %v181, %v23
  %v198 = vmul.f32 %v182, %v23
  %v199 = vmul.f32 %v183, %v23
  %v200 = vmul.f32 %v184, %v23
  %v201 = vmul.f32 %v185, %v23
  %v202 = vmul.f32 %v186, %v23
  %v203 = vmul.f32 %v187, %v23
  %v204 = vmul.f32 %v188, %v23
  %v205 = vmul.f32 %v189, %v23
  %v206 = vmul.f32 %v190, %v23
  %v207 = vmul.f32 %v191, %v23
  %v208 = vmul.f32 %v192, %v23
  %v209 = vmul.f32 %v193, %v23
  %v210 = vadd.f32 %v194, %v30
  %v211 = vadd.f32 %v195, %v30
  %v212 = vadd.f32 %v196, %v30
  %v213 = vadd.f32 %v197, %v30
  %v214 = vadd.f32 %v198, %v30
  %v215 = vadd.f32 %v199, %v30
  %v216 = vadd.f32 %v200, %v30
  %v217 = vadd.f32 %v201, %v30
  %v218 = vadd.f32 %v202, %v30
  %v219 = vadd.f32 %v203, %v30
  %v220 = vadd.f32 %v204, %v30
  %v221 = vadd.f32 %v205, %v30
  %v222 = vadd.f32 %v206, %v30
  %v223 = vadd.f32 %v207, %v30
  %v224 = vadd.f32 %v208, %v30
  %v225 = vadd.f32 %v209, %v30
  %v226 = vmax.f32 %v210, 0.0
  %v227 = vmax.f32 %v211, 0.0
  %v228 = vmax.f32 %v212, 0.0
  %v229 = vmax.f32 %v213, 0.0
  %v230 = vmax.f32 %v214, 0.0
  %v231 = vmax.f32 %v215, 0.0
  %v232 = vmax.f32 %v216, 0.0
  %v233 = vmax.f32 %v217, 0.0
  %v234 = vmax.f32 %v218, 0.0
  %v235 = vmax.f32 %v219, 0.0
  %v236 = vmax.f32 %v220, 0.0
  %v237 = vmax.f32 %v221, 0.0
  %v238 = vmax.f32 %v222, 0.0
  %v239 = vmax.f32 %v223, 0.0
  %v240 = vmax.f32 %v224, 0.0
  %v241 = vmax.f32 %v225, 0.0
  %v242 = vadd.f32 %v161, %v226
  %v243 = vadd.f32 %v162, %v227
  %v244 = vadd.f32 %v163, %v228
  %v245 = vadd.f32 %v164, %v229
  %v246 = vadd.f32 %v165, %v230
  %v247 = vadd.f32 %v166, %v231
  %v248 = vadd.f32 %v167, %v232
  %v249 = vadd.f32 %v168, %v233
  %v250 = vadd.f32 %v169, %v234
  %v251 = vadd.f32 %v170, %v235
  %v252 = vadd.f32 %v171, %v236
  %v253 = vadd.f32 %v172, %v237
  %v254 = vadd.f32 %v173, %v238
  %v255 = vadd.f32 %v174, %v239
  %v256 = vadd.f32 %v175, %v240
  %v257 = vadd.f32 %v176, %v241
  %s258 = scalar_lea.vmem %s0, 384
  %v259 = vld [vmem:[%s258] sm:$0xff]
  %v260 = vld [vmem:[%s258 + $0x8] sm:$0xff]
  %v261 = vld [vmem:[%s258 + $0x10] sm:$0xff]
  %v262 = vld [vmem:[%s258 + $0x18] sm:$0xff]
  %v263 = vld [vmem:[%s258 + $0x20] sm:$0xff]
  %v264 = vld [vmem:[%s258 + $0x28] sm:$0xff]
  %v265 = vld [vmem:[%s258 + $0x30] sm:$0xff]
  %v266 = vld [vmem:[%s258 + $0x38] sm:$0xff]
  %v267 = vld [vmem:[%s258 + $0x40] sm:$0xff]
  %v268 = vld [vmem:[%s258 + $0x48] sm:$0xff]
  %v269 = vld [vmem:[%s258 + $0x50] sm:$0xff]
  %v270 = vld [vmem:[%s258 + $0x58] sm:$0xff]
  %v271 = vld [vmem:[%s258 + $0x60] sm:$0xff]
  %v272 = vld [vmem:[%s258 + $0x68] sm:$0xff]
  %v273 = vld [vmem:[%s258 + $0x70] sm:$0xff]
  %v274 = vld [vmem:[%s258 + $0x78] sm:$0xff]
  %v275 = vmul.f32 %v259, %v23
  %v276 = vmul.f32 %v260, %v23
  %v277 = vmul.f32 %v261, %v23
  %v278 = vmul.f32 %v262, %v23
  %v279 = vmul.f32 %v263, %v23
  %v280 = vmul.f32 %v264, %v23
  %v281 = vmul.f32 %v265, %v23
  %v282 = vmul.f32 %v266, %v23
  %v283 = vmul.f32 %v267, %v23
  %v284 = vmul.f32 %v268, %v23
  %v285 = vmul.f32 %v269, %v23
  %v286 = vmul.f32 %v270, %v23
  %v287 = vmul.f32 %v271, %v23
  %v288 = vmul.f32 %v272, %v23
  %v289 = vmul.f32 %v273, %v23
  %v290 = vmul.f32 %v274, %v23
  %v291 = vadd.f32 %v275, %v30
  %v292 = vadd.f32 %v276, %v30
  %v293 = vadd.f32 %v277, %v30
  %v294 = vadd.f32 %v278, %v30
  %v295 = vadd.f32 %v279, %v30
  %v296 = vadd.f32 %v280, %v30
  %v297 = vadd.f32 %v281, %v30
  %v298 = vadd.f32 %v282, %v30
  %v299 = vadd.f32 %v283, %v30
  %v300 = vadd.f32 %v284, %v30
  %v301 = vadd.f32 %v285, %v30
  %v302 = vadd.f32 %v286, %v30
  %v303 = vadd.f32 %v287, %v30
  %v304 = vadd.f32 %v288, %v30
  %v305 = vadd.f32 %v289, %v30
  %v306 = vadd.f32 %v290, %v30
  %v307 = vmax.f32 %v291, 0.0
  %v308 = vmax.f32 %v292, 0.0
  %v309 = vmax.f32 %v293, 0.0
  %v310 = vmax.f32 %v294, 0.0
  %v311 = vmax.f32 %v295, 0.0
  %v312 = vmax.f32 %v296, 0.0
  %v313 = vmax.f32 %v297, 0.0
  %v314 = vmax.f32 %v298, 0.0
  %v315 = vmax.f32 %v299, 0.0
  %v316 = vmax.f32 %v300, 0.0
  %v317 = vmax.f32 %v301, 0.0
  %v318 = vmax.f32 %v302, 0.0
  %v319 = vmax.f32 %v303, 0.0
  %v320 = vmax.f32 %v304, 0.0
  %v321 = vmax.f32 %v305, 0.0
  %v322 = vmax.f32 %v306, 0.0
  %v323 = vadd.f32 %v242, %v307
  %v324 = vadd.f32 %v243, %v308
  %v325 = vadd.f32 %v244, %v309
  %v326 = vadd.f32 %v245, %v310
  %v327 = vadd.f32 %v246, %v311
  %v328 = vadd.f32 %v247, %v312
  %v329 = vadd.f32 %v248, %v313
  %v330 = vadd.f32 %v249, %v314
  %v331 = vadd.f32 %v250, %v315
  %v332 = vadd.f32 %v251, %v316
  %v333 = vadd.f32 %v252, %v317
  %v334 = vadd.f32 %v253, %v318
  %v335 = vadd.f32 %v254, %v319
  %v336 = vadd.f32 %v255, %v320
  %v337 = vadd.f32 %v256, %v321
  %v338 = vadd.f32 %v257, %v322
  %v339 = vpack.c.bf16 %v324, %v323
  %v340 = vpack.c.bf16 %v326, %v325
  %v341 = vpack.c.bf16 %v328, %v327
  %v342 = vpack.c.bf16 %v330, %v329
  %v343 = vpack.c.bf16 %v332, %v331
  %v344 = vpack.c.bf16 %v334, %v333
  %v345 = vpack.c.bf16 %v336, %v335
  %v346 = vpack.c.bf16 %v338, %v337
  %v347 = vld [vmem:[%s3] sm:$0x3]
  %vm348 = vcmask 31744
  %v350 = vsel %vm348, %v339, 0
  %v353 = vsel %vm348, %v340, 0
  %v356 = vsel %vm348, %v341, 0
  %v359 = vsel %vm348, %v342, 0
  %v362 = vsel %vm348, %v343, 0
  %v365 = vsel %vm348, %v344, 0
  %v368 = vsel %vm348, %v345, 0
  %v371 = vsel %vm348, %v346, 0
  %vm373 = vcmask 1041408
  %v375 = vsel %vm373, %v347, 0
  %377 = vmatprep.subr.bf16.mxu0 0
  %378 = vmatpush1.bf16.msra.mxu0 %v375
  %379 = vmatprep.subr.bf16.mxu0 0
  %380 = vmatpush1.bf16.msra.mxu0 0
  %381 = vmatprep.subr.bf16.mxu0 0
  %382 = vmatpush1.bf16.msra.mxu0 0
  %383 = vmatprep.subr.bf16.mxu0 0
  %384 = vmatpush1.bf16.msra.mxu0 0
  %385 = vmatprep.subr.bf16.mxu0 0
  %386 = vmatpush1.bf16.msra.mxu0 0
  %387 = vmatprep.subr.bf16.mxu0 0
  %388 = vmatpush1.bf16.msra.mxu0 0
  %389 = vmatprep.subr.bf16.mxu0 0
  %390 = vmatpush1.bf16.msra.mxu0 0
  %391 = vmatprep.subr.bf16.mxu0 0
  %392 = vmatpush1.bf16.msra.mxu0 0
  %393 = vmatprep.subr.bf16.mxu0 0
  %394 = vmatpush1.bf16.msra.mxu0 0
  %395 = vmatprep.subr.bf16.mxu0 0
  %396 = vmatpush1.bf16.msra.mxu0 0
  %397 = vmatprep.subr.bf16.mxu0 0
  %398 = vmatpush1.bf16.msra.mxu0 0
  %399 = vmatprep.subr.bf16.mxu0 0
  %400 = vmatpush1.bf16.msra.mxu0 0
  %401 = vmatprep.subr.bf16.mxu0 0
  %402 = vmatpush1.bf16.msra.mxu0 0
  %403 = vmatprep.subr.bf16.mxu0 0
  %404 = vmatpush1.bf16.msra.mxu0 0
  %405 = vmatprep.subr.bf16.mxu0 0
  %406 = vmatpush1.bf16.msra.mxu0 0
  %407 = vmatprep.subr.bf16.mxu0 0
  %408 = vmatpush1.bf16.msra.mxu0 0
  %409 = vmatprep.mubr.bf16.mxu0 0
  %410 = vmatmul.mubr.bf16.gmra.mrb[0].mxu0 %v350
  %v411 = vpop.f32.mrb[0].mxu0
  %v412 = vadd.f32 0.0, %v411
  %v413 = vpop.f32.mrb[0].mxu0
  %v414 = vpop.f32.mrb[0].mxu0
  %v415 = vadd.f32 0.0, %v414
  %v416 = vpop.f32.mrb[0].mxu0
  %417 = vmatprep.mubr.bf16.mxu0 0
  %418 = vmatmul.mubr.bf16.gmra.mrb[0].mxu0 %v353
  %v419 = vpop.f32.mrb[0].mxu0
  %v420 = vadd.f32 0.0, %v419
  %v421 = vpop.f32.mrb[0].mxu0
  %v422 = vpop.f32.mrb[0].mxu0
  %v423 = vadd.f32 0.0, %v422
  %v424 = vpop.f32.mrb[0].mxu0
  %425 = vmatprep.mubr.bf16.mxu0 0
  %426 = vmatmul.mubr.bf16.gmra.mrb[0].mxu0 %v356
  %v427 = vpop.f32.mrb[0].mxu0
  %v428 = vadd.f32 0.0, %v427
  %v429 = vpop.f32.mrb[0].mxu0
  %v430 = vpop.f32.mrb[0].mxu0
  %v431 = vadd.f32 0.0, %v430
  %v432 = vpop.f32.mrb[0].mxu0
  %433 = vmatprep.mubr.bf16.mxu0 0
  %434 = vmatmul.mubr.bf16.gmra.mrb[0].mxu0 %v359
  %v435 = vpop.f32.mrb[0].mxu0
  %v436 = vadd.f32 0.0, %v435
  %v437 = vpop.f32.mrb[0].mxu0
  %v438 = vpop.f32.mrb[0].mxu0
  %v439 = vadd.f32 0.0, %v438
  %v440 = vpop.f32.mrb[0].mxu0
  %441 = vmatprep.mubr.bf16.mxu0 0
  %442 = vmatmul.mubr.bf16.gmra.mrb[0].mxu0 %v362
  %v443 = vpop.f32.mrb[0].mxu0
  %v444 = vadd.f32 0.0, %v443
  %v445 = vpop.f32.mrb[0].mxu0
  %v446 = vpop.f32.mrb[0].mxu0
  %v447 = vadd.f32 0.0, %v446
  %v448 = vpop.f32.mrb[0].mxu0
  %449 = vmatprep.mubr.bf16.mxu0 0
  %450 = vmatmul.mubr.bf16.gmra.mrb[0].mxu0 %v365
  %v451 = vpop.f32.mrb[0].mxu0
  %v452 = vadd.f32 0.0, %v451
  %v453 = vpop.f32.mrb[0].mxu0
  %v454 = vpop.f32.mrb[0].mxu0
  %v455 = vadd.f32 0.0, %v454
  %v456 = vpop.f32.mrb[0].mxu0
  %457 = vmatprep.mubr.bf16.mxu0 0
  %458 = vmatmul.mubr.bf16.gmra.mrb[0].mxu0 %v368
  %v459 = vpop.f32.mrb[0].mxu0
  %v460 = vadd.f32 0.0, %v459
  %v461 = vpop.f32.mrb[0].mxu0
  %v462 = vpop.f32.mrb[0].mxu0
  %v463 = vadd.f32 0.0, %v462
  %v464 = vpop.f32.mrb[0].mxu0
  %465 = vmatprep.mubr.bf16.mxu0 0
  %466 = vmatmul.mubr.bf16.gmra.mrb[0].mxu0 %v371
  %v467 = vpop.f32.mrb[0].mxu0
  %v468 = vadd.f32 0.0, %v467
  %v469 = vpop.f32.mrb[0].mxu0
  %v470 = vpop.f32.mrb[0].mxu0
  %v471 = vadd.f32 0.0, %v470
  %v472 = vpop.f32.mrb[0].mxu0
  %473 = vdwg.mxu0
  %474 = vst [vmem:[%s4] sm:$0xff] %v412
  %475 = vst [vmem:[%s4 + $0x8] sm:$0xff] %v415
  %476 = vst [vmem:[%s4 + $0x10] sm:$0xff] %v420
  %477 = vst [vmem:[%s4 + $0x18] sm:$0xff] %v423
  %478 = vst [vmem:[%s4 + $0x20] sm:$0xff] %v428
  %479 = vst [vmem:[%s4 + $0x28] sm:$0xff] %v431
  %480 = vst [vmem:[%s4 + $0x30] sm:$0xff] %v436
  %481 = vst [vmem:[%s4 + $0x38] sm:$0xff] %v439
  %482 = vst [vmem:[%s4 + $0x40] sm:$0xff] %v444
  %483 = vst [vmem:[%s4 + $0x48] sm:$0xff] %v447
  %484 = vst [vmem:[%s4 + $0x50] sm:$0xff] %v452
  %485 = vst [vmem:[%s4 + $0x58] sm:$0xff] %v455
  %486 = vst [vmem:[%s4 + $0x60] sm:$0xff] %v460
  %487 = vst [vmem:[%s4 + $0x68] sm:$0xff] %v463
  %488 = vst [vmem:[%s4 + $0x70] sm:$0xff] %v468
  %489 = vst [vmem:[%s4 + $0x78] sm:$0xff] %v471
  // Predicated region
  $region18: #{transition_forward.1} parent=0 // pred_check
    _
  $region19: #{transition_forward.1} parent=0 // pred_check_branch
    %491 = sbr.rel (0) target = $region21
  $region20: #{transition_forward.1} parent=0 // pred_region
    _
  $region21: #{transition_forward.1} parent=0 // pred_fallthru
    _
  // Predicated region
  $region22: #{transition_forward.1} parent=0 // pred_check
    _
  $region23: #{transition_forward.1} parent=0 // pred_check_branch
    %493 = sbr.rel (0) target = $region25
  $region24: #{transition_forward.1} parent=0 // pred_region
    _
  $region25: #{transition_forward.1} parent=0 // pred_fallthru
    _

</llo_original>
